<compile_context>
chip_gen: v5e
topology: v5e:2x2
jax: 0.10.0
libtpu: 0.0.40
codegen_flags: <defaults>
</compile_context>

<pallas_src>
import functools

import jax
import jax.numpy as jnp
from jax.experimental import pallas as pl
from jax.experimental.pallas import tpu as pltpu


def _logits_stats_kernel(x_ref, w1_ref, b1_ref, w2_ref, b2_ref, w3_ref, b3_ref,
                         w4_ref, b4_ref, logits_ref, m_ref, l_ref, m_sc, l_sc,
                         *, batch):
    i = pl.program_id(0)

    @pl.when(i == 0)
    def _():
        m_sc[...] = jnp.full_like(m_sc, -jnp.inf)
        l_sc[...] = jnp.zeros_like(l_sc)

    x = x_ref[...]                                                   # (16, TB)
    h = jnp.maximum(
        jnp.dot(w1_ref[...], x, preferred_element_type=jnp.float32) + b1_ref[...], 0.0)
    h = jnp.maximum(
        jnp.dot(w2_ref[...], h, preferred_element_type=jnp.float32) + b2_ref[...], 0.0)
    h = jnp.maximum(
        jnp.dot(w3_ref[...], h, preferred_element_type=jnp.float32) + b3_ref[...], 0.0)
    logits = jnp.dot(w4_ref[...], h, preferred_element_type=jnp.float32) + b4_ref[...]

    # Mask padded batch columns (lane positions >= batch) with -inf.
    tb = logits.shape[1]
    col = jax.lax.broadcasted_iota(jnp.int32, (1, tb), 1) + i * tb
    logits = jnp.where(col < batch, logits, -jnp.inf)
    logits_ref[...] = logits                                         # lane-dense (5, TB)

    # Online softmax statistics over the batch (lane) axis, carried across tiles.
    t_max = jnp.max(logits, axis=1, keepdims=True)                   # (5, 1)
    m_new = jnp.maximum(m_sc[...], t_max)
    l_sc[...] = (l_sc[...] * jnp.exp(m_sc[...] - m_new)
                 + jnp.sum(jnp.exp(logits - m_new), axis=1, keepdims=True))
    m_sc[...] = m_new

    @pl.when(i == pl.num_programs(0) - 1)
    def _():
        m_ref[...] = m_sc[...]
        l_ref[...] = l_sc[...]


def _normalize_kernel(logits_ref, m_ref, l_ref, o_ref):
    e = jnp.exp(logits_ref[...] - m_ref[...])        # padded cols: exp(-inf)=0
    o_ref[...] = e / l_ref[...]


def _pick_batch_tile(batch):
    # Lane-dense batch tile: multiple of 128, large enough to amortize the
    # ~0.35 us/step overhead, small enough to fit v7x's 64 MiB VMEM with
    # double-buffering (per step: ~2*TB*16*4 B input + ~2*TB*5*4 B output).
    for tb in (1024, 512, 256, 128):
        if batch >= tb:
            return tb
    return 128


def mlp_forward(x, params, tb=None):
    """x: (B, 16) float32.  params: PyTorch-layout (out,in) weights + (out,) biases."""
    B = x.shape[0]
    TB = tb if tb is not None else _pick_batch_tile(B)
    num_tiles = pl.cdiv(B, TB)
    B_pad = num_tiles * TB

    # Feature-major input: batch on the lane axis, padded to a tile multiple.
    xt = jnp.pad(x.astype(jnp.float32).T, ((0, 0), (0, B_pad - B)))

    ws, bs = [], []
    for name in ("fc1", "fc2", "fc3", "fc4"):
        ws.append(params[name + "_w"])                 # (out, in), no transpose needed
        bs.append(params[name + "_b"].reshape(-1, 1))  # (out, 1) for row-wise broadcast

    resident = lambda i: (0, 0)   # weights/biases: same block every step -> stay in VMEM
    in_specs = [pl.BlockSpec((16, TB), lambda i: (0, i))]
    inputs = [xt]
    for w, b in zip(ws, bs):
        in_specs += [pl.BlockSpec(w.shape, resident), pl.BlockSpec(b.shape, resident)]
        inputs += [w, b]

    logits, m, l = pl.pallas_call(
        functools.partial(_logits_stats_kernel, batch=B),
        out_shape=(jax.ShapeDtypeStruct((5, B_pad), jnp.float32),
                   jax.ShapeDtypeStruct((5, 1), jnp.float32),
                   jax.ShapeDtypeStruct((5, 1), jnp.float32)),
        grid_spec=pltpu.PrefetchScalarGridSpec(
            num_scalar_prefetch=0,
            grid=(num_tiles,),
            in_specs=in_specs,
            out_specs=(pl.BlockSpec((5, TB), lambda i: (0, i)),
                       pl.BlockSpec((5, 1), resident),
                       pl.BlockSpec((5, 1), resident)),
            scratch_shapes=[pltpu.VMEM((5, 1), jnp.float32),
                            pltpu.VMEM((5, 1), jnp.float32)]),
        compiler_params=pltpu.CompilerParams(
            dimension_semantics=("arbitrary",)),   # online-softmax accumulator axis
    )(*inputs)

    probs_t = pl.pallas_call(
        _normalize_kernel,
        out_shape=jax.ShapeDtypeStruct((5, B_pad), jnp.float32),
        grid_spec=pltpu.PrefetchScalarGridSpec(
            num_scalar_prefetch=0,
            grid=(num_tiles,),
            in_specs=[pl.BlockSpec((5, TB), lambda i: (0, i)),
                      pl.BlockSpec((5, 1), resident),
                      pl.BlockSpec((5, 1), resident)],
            out_specs=pl.BlockSpec((5, TB), lambda i: (0, i))),
        compiler_params=pltpu.CompilerParams(
            dimension_semantics=("parallel",)),    # independent tiles (2 TCs on v7x)
    )(logits, m, l)

    return probs_t[:, :B].T    # back to (B, 5)


def init_params(key):
    """Deterministic synthetic init matching nn.Linear shapes (out, in) / (out,)."""
    dims = [("fc1", 16, 64), ("fc2", 64, 32), ("fc3", 32, 32), ("fc4", 32, 5)]
    params = {}
    for name, d_in, d_out in dims:
        key, kw, kb = jax.random.split(key, 3)
        bound = 1.0 / (d_in ** 0.5)
        params[name + "_w"] = jax.random.uniform(
            kw, (d_out, d_in), jnp.float32, minval=-bound, maxval=bound)
        params[name + "_b"] = jax.random.uniform(
            kb, (d_out,), jnp.float32, minval=-bound, maxval=bound)
    return params


def mlp_reference(x, params):
    h = x
    for name in ("fc1", "fc2", "fc3"):
        h = jnp.maximum(h @ params[name + "_w"].T + params[name + "_b"], 0.0)
    logits = h @ params["fc4_w"].T + params["fc4_b"]
    return jax.nn.softmax(logits, axis=0)   # Softmax over the batch axis, as in the module


if __name__ == "__main__":
    key = jax.random.PRNGKey(0)
    key, kx1, kx2 = jax.random.split(key, 3)
    params = init_params(key)

    # Small single-tile case (B=8 -> one padded 128-wide tile).
    B = 8
    x = jax.random.normal(kx1, (B, 16), jnp.float32)
    out = jax.block_until_ready(mlp_forward(x, params))
    ref = mlp_reference(x, params)
    assert out.shape == (B, 5)
    assert jnp.allclose(out, ref, atol=1e-5, rtol=1e-5), "mismatch vs reference (B=8)"

    # Multi-tile case with padding: exercises the online cross-tile softmax.
    B2 = 300
    x2 = jax.random.normal(kx2, (B2, 16), jnp.float32)
    out2 = jax.block_until_ready(mlp_forward(x2, params, tb=128))
    ref2 = mlp_reference(x2, params)
    assert out2.shape == (B2, 5)
    assert jnp.allclose(out2, ref2, atol=1e-5, rtol=1e-5), "mismatch vs reference (B=300)"

    print("KERNEL_OK")
</pallas_src>

<mosaic_0001>
module attributes {stable_mosaic.version = 11 : i64} {
  func.func @_logits_stats_kernel(%arg0: i32, %arg1: memref<16x128xf32, #tpu.memory_space<vmem>>, %arg2: memref<64x16xf32, #tpu.memory_space<vmem>>, %arg3: memref<64x1xf32, #tpu.memory_space<vmem>>, %arg4: memref<32x64xf32, #tpu.memory_space<vmem>>, %arg5: memref<32x1xf32, #tpu.memory_space<vmem>>, %arg6: memref<32x32xf32, #tpu.memory_space<vmem>>, %arg7: memref<32x1xf32, #tpu.memory_space<vmem>>, %arg8: memref<5x32xf32, #tpu.memory_space<vmem>>, %arg9: memref<5x1xf32, #tpu.memory_space<vmem>>, %arg10: memref<5x128xf32, #tpu.memory_space<vmem>>, %arg11: memref<5x1xf32, #tpu.memory_space<vmem>>, %arg12: memref<5x1xf32, #tpu.memory_space<vmem>>, %arg13: memref<5x1xf32, #tpu.memory_space<vmem>>, %arg14: memref<5x1xf32, #tpu.memory_space<vmem>>) attributes {dimension_semantics = [#tpu.dimension_semantics<arbitrary>], iteration_bounds = array<i64: 1>, scalar_prefetch = 0 : i64, scratch_operands = 2 : i64, tpu.core_type = #tpu.core_type<tc>, window_params = [{transform_indices = @transform_0, window_bounds = array<i64: 16, 128>}, {pipeline_mode = #tpu.pipeline_mode<synchronous>, transform_indices = @transform_1, window_bounds = array<i64: 64, 16>}, {pipeline_mode = #tpu.pipeline_mode<synchronous>, transform_indices = @transform_2, window_bounds = array<i64: 64, 1>}, {pipeline_mode = #tpu.pipeline_mode<synchronous>, transform_indices = @transform_3, window_bounds = array<i64: 32, 64>}, {pipeline_mode = #tpu.pipeline_mode<synchronous>, transform_indices = @transform_4, window_bounds = array<i64: 32, 1>}, {pipeline_mode = #tpu.pipeline_mode<synchronous>, transform_indices = @transform_5, window_bounds = array<i64: 32, 32>}, {pipeline_mode = #tpu.pipeline_mode<synchronous>, transform_indices = @transform_6, window_bounds = array<i64: 32, 1>}, {pipeline_mode = #tpu.pipeline_mode<synchronous>, transform_indices = @transform_7, window_bounds = array<i64: 5, 32>}, {pipeline_mode = #tpu.pipeline_mode<synchronous>, transform_indices = @transform_8, window_bounds = array<i64: 5, 1>}, {transform_indices = @transform_9, window_bounds = array<i64: 5, 128>}, {pipeline_mode = #tpu.pipeline_mode<synchronous>, transform_indices = @transform_10, window_bounds = array<i64: 5, 1>}, {pipeline_mode = #tpu.pipeline_mode<synchronous>, transform_indices = @transform_11, window_bounds = array<i64: 5, 1>}]} {
    %c0_i32 = arith.constant 0 : i32
    %0 = arith.cmpi eq, %arg0, %c0_i32 : i32
    %1 = arith.extui %0 : i1 to i32
    %c0_i32_0 = arith.constant 0 : i32
    %2 = arith.cmpi ne, %1, %c0_i32_0 : i32
    scf.if %2 {
      %cst_41 = arith.constant 0xFF800000 : f32
      %61 = vector.broadcast %cst_41 : f32 to vector<5x1xf32>
      %c0_42 = arith.constant 0 : index
      %c0_43 = arith.constant 0 : index
      %62 = vector.load %arg13[%c0_42, %c0_43] : memref<5x1xf32, #tpu.memory_space<vmem>>, vector<5x1xf32>
      tpu.vector_store %arg13[%c0_42, %c0_43], %61 {strides = array<i32>} : memref<5x1xf32, #tpu.memory_space<vmem>>, vector<5x1xf32>,
      %cst_44 = arith.constant 0.000000e+00 : f32
      %63 = vector.broadcast %cst_44 : f32 to vector<5x1xf32>
      %c0_45 = arith.constant 0 : index
      %c0_46 = arith.constant 0 : index
      %64 = vector.load %arg14[%c0_45, %c0_46] : memref<5x1xf32, #tpu.memory_space<vmem>>, vector<5x1xf32>
      tpu.vector_store %arg14[%c0_45, %c0_46], %63 {strides = array<i32>} : memref<5x1xf32, #tpu.memory_space<vmem>>, vector<5x1xf32>,
    } else {
    }
    %c0 = arith.constant 0 : index
    %c0_1 = arith.constant 0 : index
    %3 = vector.load %arg1[%c0, %c0_1] : memref<16x128xf32, #tpu.memory_space<vmem>>, vector<16x128xf32>
    %c0_2 = arith.constant 0 : index
    %c0_3 = arith.constant 0 : index
    %4 = vector.load %arg2[%c0_2, %c0_3] : memref<64x16xf32, #tpu.memory_space<vmem>>, vector<64x16xf32>
    %cst = arith.constant dense<0.000000e+00> : vector<64x128xf32>
    %5 = tpu.matmul %4, %3, %cst {dimension_numbers = #tpu.dot_dimension_numbers<[1], [0], [0], [1], [0, 0, 1, 1], [], []>} : vector<64x16xf32>, vector<16x128xf32>, vector<64x128xf32> -> vector<64x128xf32>
    %c0_4 = arith.constant 0 : index
    %c0_5 = arith.constant 0 : index
    %6 = vector.load %arg3[%c0_4, %c0_5] : memref<64x1xf32, #tpu.memory_space<vmem>>, vector<64x1xf32>
    %7 = vector.broadcast %6 : vector<64x1xf32> to vector<64x128xf32>
    %8 = arith.addf %5, %7 : vector<64x128xf32>
    %cst_6 = arith.constant 0.000000e+00 : f32
    %9 = vector.broadcast %cst_6 : f32 to vector<64x128xf32>
    %10 = arith.maximumf %8, %9 : vector<64x128xf32>
    %c0_7 = arith.constant 0 : index
    %c0_8 = arith.constant 0 : index
    %11 = vector.load %arg4[%c0_7, %c0_8] : memref<32x64xf32, #tpu.memory_space<vmem>>, vector<32x64xf32>
    %cst_9 = arith.constant dense<0.000000e+00> : vector<32x128xf32>
    %12 = tpu.matmul %11, %10, %cst_9 {dimension_numbers = #tpu.dot_dimension_numbers<[1], [0], [0], [1], [0, 0, 1, 1], [], []>} : vector<32x64xf32>, vector<64x128xf32>, vector<32x128xf32> -> vector<32x128xf32>
    %c0_10 = arith.constant 0 : index
    %c0_11 = arith.constant 0 : index
    %13 = vector.load %arg5[%c0_10, %c0_11] : memref<32x1xf32, #tpu.memory_space<vmem>>, vector<32x1xf32>
    %14 = vector.broadcast %13 : vector<32x1xf32> to vector<32x128xf32>
    %15 = arith.addf %12, %14 : vector<32x128xf32>
    %cst_12 = arith.constant 0.000000e+00 : f32
    %16 = vector.broadcast %cst_12 : f32 to vector<32x128xf32>
    %17 = arith.maximumf %15, %16 : vector<32x128xf32>
    %c0_13 = arith.constant 0 : index
    %c0_14 = arith.constant 0 : index
    %18 = vector.load %arg6[%c0_13, %c0_14] : memref<32x32xf32, #tpu.memory_space<vmem>>, vector<32x32xf32>
    %cst_15 = arith.constant dense<0.000000e+00> : vector<32x128xf32>
    %19 = tpu.matmul %18, %17, %cst_15 {dimension_numbers = #tpu.dot_dimension_numbers<[1], [0], [0], [1], [0, 0, 1, 1], [], []>} : vector<32x32xf32>, vector<32x128xf32>, vector<32x128xf32> -> vector<32x128xf32>
    %c0_16 = arith.constant 0 : index
    %c0_17 = arith.constant 0 : index
    %20 = vector.load %arg7[%c0_16, %c0_17] : memref<32x1xf32, #tpu.memory_space<vmem>>, vector<32x1xf32>
    %21 = vector.broadcast %20 : vector<32x1xf32> to vector<32x128xf32>
    %22 = arith.addf %19, %21 : vector<32x128xf32>
    %cst_18 = arith.constant 0.000000e+00 : f32
    %23 = vector.broadcast %cst_18 : f32 to vector<32x128xf32>
    %24 = arith.maximumf %22, %23 : vector<32x128xf32>
    %c0_19 = arith.constant 0 : index
    %c0_20 = arith.constant 0 : index
    %25 = vector.load %arg8[%c0_19, %c0_20] : memref<5x32xf32, #tpu.memory_space<vmem>>, vector<5x32xf32>
    %cst_21 = arith.constant dense<0.000000e+00> : vector<5x128xf32>
    %26 = tpu.matmul %25, %24, %cst_21 {dimension_numbers = #tpu.dot_dimension_numbers<[1], [0], [0], [1], [0, 0, 1, 1], [], []>} : vector<5x32xf32>, vector<32x128xf32>, vector<5x128xf32> -> vector<5x128xf32>
    %c0_22 = arith.constant 0 : index
    %c0_23 = arith.constant 0 : index
    %27 = vector.load %arg9[%c0_22, %c0_23] : memref<5x1xf32, #tpu.memory_space<vmem>>, vector<5x1xf32>
    %28 = vector.broadcast %27 : vector<5x1xf32> to vector<5x128xf32>
    %29 = arith.addf %26, %28 : vector<5x128xf32>
    %30 = tpu.iota {dimensions = array<i32: 1>} : vector<1x128xi32>
    %c128_i32 = arith.constant 128 : i32
    %31 = arith.muli %arg0, %c128_i32 : i32
    %32 = vector.broadcast %31 : i32 to vector<1x128xi32>
    %33 = arith.addi %30, %32 : vector<1x128xi32>
    %c8_i32 = arith.constant 8 : i32
    %34 = vector.broadcast %c8_i32 : i32 to vector<1x128xi32>
    %35 = arith.cmpi slt, %33, %34 : vector<1x128xi32>
    %cst_24 = arith.constant 0xFF800000 : f32
    %36 = vector.shape_cast %35 : vector<1x128xi1> to vector<1x128xi1>
    %37 = vector.broadcast %36 : vector<1x128xi1> to vector<5x128xi1>
    %38 = vector.broadcast %cst_24 : f32 to vector<5x128xf32>
    %39 = arith.select %37, %29, %38 : vector<5x128xi1>, vector<5x128xf32>
    %c0_25 = arith.constant 0 : index
    %c0_26 = arith.constant 0 : index
    %40 = vector.load %arg10[%c0_25, %c0_26] : memref<5x128xf32, #tpu.memory_space<vmem>>, vector<5x128xf32>
    tpu.vector_store %arg10[%c0_25, %c0_26], %39 {strides = array<i32>} : memref<5x128xf32, #tpu.memory_space<vmem>>, vector<5x128xf32>,
    %cst_27 = arith.constant dense<0xFF800000> : vector<5xf32>
    %41 = vector.multi_reduction <maximumf>, %39, %cst_27 [1] : vector<5x128xf32> to vector<5xf32>
    %42 = vector.shape_cast %41 : vector<5xf32> to vector<5x1xf32>
    %c0_28 = arith.constant 0 : index
    %c0_29 = arith.constant 0 : index
    %43 = vector.load %arg13[%c0_28, %c0_29] : memref<5x1xf32, #tpu.memory_space<vmem>>, vector<5x1xf32>
    %44 = arith.maximumf %43, %42 : vector<5x1xf32>
    %c0_30 = arith.constant 0 : index
    %c0_31 = arith.constant 0 : index
    %45 = vector.load %arg14[%c0_30, %c0_31] : memref<5x1xf32, #tpu.memory_space<vmem>>, vector<5x1xf32>
    %c0_32 = arith.constant 0 : index
    %c0_33 = arith.constant 0 : index
    %46 = vector.load %arg13[%c0_32, %c0_33] : memref<5x1xf32, #tpu.memory_space<vmem>>, vector<5x1xf32>
    %47 = arith.subf %46, %44 : vector<5x1xf32>
    %48 = math.exp %47 : vector<5x1xf32>
    %49 = arith.mulf %45, %48 : vector<5x1xf32>
    %50 = vector.broadcast %44 : vector<5x1xf32> to vector<5x128xf32>
    %51 = arith.subf %39, %50 : vector<5x128xf32>
    %52 = math.exp %51 : vector<5x128xf32>
    %cst_34 = arith.constant dense<0.000000e+00> : vector<5xf32>
    %53 = vector.multi_reduction <add>, %52, %cst_34 [1] : vector<5x128xf32> to vector<5xf32>
    %54 = vector.shape_cast %53 : vector<5xf32> to vector<5x1xf32>
    %55 = arith.addf %49, %54 : vector<5x1xf32>
    %c0_35 = arith.constant 0 : index
    %c0_36 = arith.constant 0 : index
    %56 = vector.load %arg14[%c0_35, %c0_36] : memref<5x1xf32, #tpu.memory_space<vmem>>, vector<5x1xf32>
    tpu.vector_store %arg14[%c0_35, %c0_36], %55 {strides = array<i32>} : memref<5x1xf32, #tpu.memory_space<vmem>>, vector<5x1xf32>,
    %c0_37 = arith.constant 0 : index
    %c0_38 = arith.constant 0 : index
    %57 = vector.load %arg13[%c0_37, %c0_38] : memref<5x1xf32, #tpu.memory_space<vmem>>, vector<5x1xf32>
    tpu.vector_store %arg13[%c0_37, %c0_38], %44 {strides = array<i32>} : memref<5x1xf32, #tpu.memory_space<vmem>>, vector<5x1xf32>,
    %c0_i32_39 = arith.constant 0 : i32
    %58 = arith.cmpi eq, %arg0, %c0_i32_39 : i32
    %59 = arith.extui %58 : i1 to i32
    %c0_i32_40 = arith.constant 0 : i32
    %60 = arith.cmpi ne, %59, %c0_i32_40 : i32
    scf.if %60 {
      %c0_41 = arith.constant 0 : index
      %c0_42 = arith.constant 0 : index
      %61 = vector.load %arg13[%c0_41, %c0_42] : memref<5x1xf32, #tpu.memory_space<vmem>>, vector<5x1xf32>
      %c0_43 = arith.constant 0 : index
      %c0_44 = arith.constant 0 : index
      %62 = vector.load %arg11[%c0_43, %c0_44] : memref<5x1xf32, #tpu.memory_space<vmem>>, vector<5x1xf32>
      tpu.vector_store %arg11[%c0_43, %c0_44], %61 {strides = array<i32>} : memref<5x1xf32, #tpu.memory_space<vmem>>, vector<5x1xf32>,
      %c0_45 = arith.constant 0 : index
      %c0_46 = arith.constant 0 : index
      %63 = vector.load %arg14[%c0_45, %c0_46] : memref<5x1xf32, #tpu.memory_space<vmem>>, vector<5x1xf32>
      %c0_47 = arith.constant 0 : index
      %c0_48 = arith.constant 0 : index
      %64 = vector.load %arg12[%c0_47, %c0_48] : memref<5x1xf32, #tpu.memory_space<vmem>>, vector<5x1xf32>
      tpu.vector_store %arg12[%c0_47, %c0_48], %63 {strides = array<i32>} : memref<5x1xf32, #tpu.memory_space<vmem>>, vector<5x1xf32>,
    } else {
    }
    return
  }
  func.func @transform_0(%arg0: i32) -> (i32, i32) {
    %c0_i32 = arith.constant 0 : i32
    %c0_i32_0 = arith.constant 0 : i32
    return %c0_i32, %arg0 : i32, i32
  }
  func.func @transform_1(%arg0: i32) -> (i32, i32) {
    %c0_i32 = arith.constant 0 : i32
    %c0_i32_0 = arith.constant 0 : i32
    %c0_i32_1 = arith.constant 0 : i32
    return %c0_i32, %c0_i32_0 : i32, i32
  }
  func.func @transform_2(%arg0: i32) -> (i32, i32) {
    %c0_i32 = arith.constant 0 : i32
    %c0_i32_0 = arith.constant 0 : i32
    %c0_i32_1 = arith.constant 0 : i32
    return %c0_i32, %c0_i32_0 : i32, i32
  }
  func.func @transform_3(%arg0: i32) -> (i32, i32) {
    %c0_i32 = arith.constant 0 : i32
    %c0_i32_0 = arith.constant 0 : i32
    %c0_i32_1 = arith.constant 0 : i32
    return %c0_i32, %c0_i32_0 : i32, i32
  }
  func.func @transform_4(%arg0: i32) -> (i32, i32) {
    %c0_i32 = arith.constant 0 : i32
    %c0_i32_0 = arith.constant 0 : i32
    %c0_i32_1 = arith.constant 0 : i32
    return %c0_i32, %c0_i32_0 : i32, i32
  }
  func.func @transform_5(%arg0: i32) -> (i32, i32) {
    %c0_i32 = arith.constant 0 : i32
    %c0_i32_0 = arith.constant 0 : i32
    %c0_i32_1 = arith.constant 0 : i32
    return %c0_i32, %c0_i32_0 : i32, i32
  }
  func.func @transform_6(%arg0: i32) -> (i32, i32) {
    %c0_i32 = arith.constant 0 : i32
    %c0_i32_0 = arith.constant 0 : i32
    %c0_i32_1 = arith.constant 0 : i32
    return %c0_i32, %c0_i32_0 : i32, i32
  }
  func.func @transform_7(%arg0: i32) -> (i32, i32) {
    %c0_i32 = arith.constant 0 : i32
    %c0_i32_0 = arith.constant 0 : i32
    %c0_i32_1 = arith.constant 0 : i32
    return %c0_i32, %c0_i32_0 : i32, i32
  }
  func.func @transform_8(%arg0: i32) -> (i32, i32) {
    %c0_i32 = arith.constant 0 : i32
    %c0_i32_0 = arith.constant 0 : i32
    %c0_i32_1 = arith.constant 0 : i32
    return %c0_i32, %c0_i32_0 : i32, i32
  }
  func.func @transform_9(%arg0: i32) -> (i32, i32) {
    %c0_i32 = arith.constant 0 : i32
    %c0_i32_0 = arith.constant 0 : i32
    return %c0_i32, %arg0 : i32, i32
  }
  func.func @transform_10(%arg0: i32) -> (i32, i32) {
    %c0_i32 = arith.constant 0 : i32
    %c0_i32_0 = arith.constant 0 : i32
    %c0_i32_1 = arith.constant 0 : i32
    return %c0_i32, %c0_i32_0 : i32, i32
  }
  func.func @transform_11(%arg0: i32) -> (i32, i32) {
    %c0_i32 = arith.constant 0 : i32
    %c0_i32_0 = arith.constant 0 : i32
    %c0_i32_1 = arith.constant 0 : i32
    return %c0_i32, %c0_i32_0 : i32, i32
  }
}

</mosaic_0001>

<llo_original>
// kernel: tpu_custom_call.1
$region0: #{tpu_custom_call.1}
  #allocation0 [shape = 'u32[]', space=smem, size = 0x4, offset = 0x4, fixed_abs, tag = 'smem constant byte address 0x4 - core index']
  #allocation1 [shape = 'u32[72,128]{1,0:T(1,128)}', space=vmem, size = 0x9000, scoped, tag = 'internal scratch']
  #allocation2 [shape = 'f32[5,1]{1,0:T(8,128)}', space=vmem, size = 0x1000, scoped, tag = 'scratch operand']
  #allocation3 [shape = 'f32[5,1]{1,0:T(8,128)}', space=vmem, size = 0x1000, scoped, tag = 'scratch operand']
  %s0 = inlined_call_operand.vmem [shape: f32[16,128], index: 0, kind: input, shape index: {}]
  %s1 = inlined_call_operand.vmem [shape: f32[64,16], index: 1, kind: input, shape index: {}]
  %s2 = inlined_call_operand.vmem [shape: f32[64,1], index: 2, kind: input, shape index: {}]
  %s3 = inlined_call_operand.vmem [shape: f32[32,64], index: 3, kind: input, shape index: {}]
  %s4 = inlined_call_operand.vmem [shape: f32[32,1], index: 4, kind: input, shape index: {}]
  %s5 = inlined_call_operand.vmem [shape: f32[32,32], index: 5, kind: input, shape index: {}]
  %s6 = inlined_call_operand.vmem [shape: f32[32,1], index: 6, kind: input, shape index: {}]
  %s7 = inlined_call_operand.vmem [shape: f32[5,32], index: 7, kind: input, shape index: {}]
  %s8 = inlined_call_operand.vmem [shape: f32[5,1], index: 8, kind: input, shape index: {}]
  %s9 = inlined_call_operand.hbm [shape: f32[5,128], index: 9, kind: output, shape index: {0}]
  %s10 = inlined_call_operand.vmem [shape: f32[5,1], index: 10, kind: output, shape index: {1}]
  %s11 = inlined_call_operand.vmem [shape: f32[5,1], index: 11, kind: output, shape index: {2}]
  %12 = xla_tuple %s9, %s10, %s11
  %s13 = sld [smem:[#allocation0]]
  $region70: #{tpu_custom_call.1} parent=0
    _
  %s15 = ssub.s32 1, %s13
  %s16 = scalar_select 0, %s15, %s13
  $region1: #{tpu_custom_call.1} parent=0
    #allocation4 [shape = 'u8[4096]{0}', space=vmem, size = 0x1000, scoped, tag = 'output window, operand 0, single buffered']
    #allocation5 [shape = 's32[1]{0}', space=sflag, size = 0x4, scoped, tag = 'scoped memory for tpu_custom_call.1']
    %17 = vsyncpa [#allocation5], 0
    // Predicated region
    $region2: #{tpu_custom_call.1} parent=1 // pred_check
      _
    $region3: #{tpu_custom_call.1} parent=1 // pred_check_branch
      %19 = sbr.rel (0) target = $region5
    $region4: #{tpu_custom_call.1} parent=1 // pred_region
      _
    $region5: #{tpu_custom_call.1} parent=1 // pred_fallthru
      _
    // Predicated region
    $region6: #{tpu_custom_call.1} parent=1 // pred_check
      _
    $region7: #{tpu_custom_call.1} parent=1 // pred_check_branch
      %21 = sbr.rel (0) target = $region9
    $region8: #{tpu_custom_call.1} parent=1 // pred_region
      _
    $region9: #{tpu_custom_call.1} parent=1 // pred_fallthru
      _
    // Predicated region
    $region10: #{tpu_custom_call.1} parent=1 // pred_check
      _
    $region11: #{tpu_custom_call.1} parent=1 // pred_check_branch
      %23 = sbr.rel (0) target = $region13
    $region12: #{tpu_custom_call.1} parent=1 // pred_region
      _
    $region13: #{tpu_custom_call.1} parent=1 // pred_fallthru
      _
    // Predicated region
    $region14: #{tpu_custom_call.1} parent=1 // pred_check
      _
    $region15: #{tpu_custom_call.1} parent=1 // pred_check_branch
      %25 = sbr.rel (0) target = $region17
    $region16: #{tpu_custom_call.1} parent=1 // pred_region
      _
    $region17: #{tpu_custom_call.1} parent=1 // pred_fallthru
      _
    // Predicated region
    $region18: #{tpu_custom_call.1} parent=1 // pred_check
      _
    $region19: #{tpu_custom_call.1} parent=1 // pred_check_branch
      %27 = sbr.rel (0) target = $region21
    $region20: #{tpu_custom_call.1} parent=1 // pred_region
      _
    $region21: #{tpu_custom_call.1} parent=1 // pred_fallthru
      _
    // Predicated region
    $region22: #{tpu_custom_call.1} parent=1 // pred_check
      _
    $region23: #{tpu_custom_call.1} parent=1 // pred_check_branch
      %29 = sbr.rel (0) target = $region25
    $region24: #{tpu_custom_call.1} parent=1 // pred_region
      _
    $region25: #{tpu_custom_call.1} parent=1 // pred_fallthru
      _
    // Predicated region
    $region26: #{tpu_custom_call.1} parent=1 // pred_check
      _
    $region27: #{tpu_custom_call.1} parent=1 // pred_check_branch
      %31 = sbr.rel (0) target = $region29
    $region28: #{tpu_custom_call.1} parent=1 // pred_region
      _
    $region29: #{tpu_custom_call.1} parent=1 // pred_fallthru
      _
    // Predicated region
    $region30: #{tpu_custom_call.1} parent=1 // pred_check
      _
    $region31: #{tpu_custom_call.1} parent=1 // pred_check_branch
      %33 = sbr.rel (0) target = $region33
    $region32: #{tpu_custom_call.1} parent=1 // pred_region
      _
    $region33: #{tpu_custom_call.1} parent=1 // pred_fallthru
      _
    // Predicated region
    $region34: #{tpu_custom_call.1} parent=1 // pred_check
      _
    $region35: #{tpu_custom_call.1} parent=1 // pred_check_branch
      %35 = sbr.rel (0) target = $region37
    $region36: #{tpu_custom_call.1} parent=1 // pred_region
      _
    $region37: #{tpu_custom_call.1} parent=1 // pred_fallthru
      _
    %p36 = scmp.eq.s32.totalorder 0, 0
    // Predicated region
    $region38: #{tpu_custom_call.1} parent=1 // pred_check
      %p37 = pneg %p36
    $region39: #{tpu_custom_call.1} parent=1 // pred_check_branch
      %39 = sbr.rel (%p37) target = $region41
    $region40: #{tpu_custom_call.1} parent=1 // pred_region
      %vm40 = vcmask 4096
      %41 = vst.msk [vmem:[#allocation2] sm:$0x1f] %vm40, -inf
      %42 = vst.msk [vmem:[#allocation3] sm:$0x1f] %vm40, 0.0
    $region41: #{tpu_custom_call.1} parent=1 // pred_fallthru
      _
    %v43 = vld [vmem:[%s0] sm:$0xff]
    %v44 = vld [vmem:[%s0 + $0x8] sm:$0xff]
    %v45 = vld [vmem:[%s1] sm:$0xff]
    %v46 = vld [vmem:[%s1 + $0x8] sm:$0xff]
    %v47 = vld [vmem:[%s1 + $0x10] sm:$0xff]
    %v48 = vld [vmem:[%s1 + $0x18] sm:$0xff]
    %v49 = vld [vmem:[%s1 + $0x20] sm:$0xff]
    %v50 = vld [vmem:[%s1 + $0x28] sm:$0xff]
    %v51 = vld [vmem:[%s1 + $0x30] sm:$0xff]
    %v52 = vld [vmem:[%s1 + $0x38] sm:$0xff]
    %v53 = vld [vmem:[%s2] sm:$0xff]
    %v54 = vld [vmem:[%s2 + $0x8] sm:$0xff]
    %v55 = vld [vmem:[%s2 + $0x10] sm:$0xff]
    %v56 = vld [vmem:[%s2 + $0x18] sm:$0xff]
    %v57 = vld [vmem:[%s2 + $0x20] sm:$0xff]
    %v58 = vld [vmem:[%s2 + $0x28] sm:$0xff]
    %v59 = vld [vmem:[%s2 + $0x30] sm:$0xff]
    %v60 = vld [vmem:[%s2 + $0x38] sm:$0xff]
    %62 = vset.pattern.permute.xlu0 0
    %63 = vperm.xlu0 %62, %v53
    %v64 = vpop.permute.xlu0 %63
    %67 = vset.pattern.permute.xlu0 0
    %68 = vperm.xlu0 %67, %v54
    %v69 = vpop.permute.xlu0 %68
    %72 = vset.pattern.permute.xlu0 0
    %73 = vperm.xlu0 %72, %v55
    %v74 = vpop.permute.xlu0 %73
    %77 = vset.pattern.permute.xlu0 0
    %78 = vperm.xlu0 %77, %v56
    %v79 = vpop.permute.xlu0 %78
    %82 = vset.pattern.permute.xlu0 0
    %83 = vperm.xlu0 %82, %v57
    %v84 = vpop.permute.xlu0 %83
    %87 = vset.pattern.permute.xlu0 0
    %88 = vperm.xlu0 %87, %v58
    %v89 = vpop.permute.xlu0 %88
    %92 = vset.pattern.permute.xlu0 0
    %93 = vperm.xlu0 %92, %v59
    %v94 = vpop.permute.xlu0 %93
    %97 = vset.pattern.permute.xlu0 0
    %98 = vperm.xlu0 %97, %v60
    %v99 = vpop.permute.xlu0 %98
    %vm101 = vcmask 130048
    %v103 = vsel %vm101, %v45, 0
    %v106 = vsel %vm101, %v46, 0
    %v109 = vsel %vm101, %v47, 0
    %v112 = vsel %vm101, %v48, 0
    %v115 = vsel %vm101, %v49, 0
    %v118 = vsel %vm101, %v50, 0
    %v121 = vsel %vm101, %v51, 0
    %v124 = vsel %vm101, %v52, 0
    %126 = vmatpush.msra.mxu0 0.0
    %127 = vmatpush.msra.mxu0 0.0
    %128 = vmatpush.msra.mxu0 0.0
    %129 = vmatpush.msra.mxu0 0.0
    %130 = vmatpush.msra.mxu0 0.0
    %131 = vmatpush.msra.mxu0 0.0
    %132 = vmatpush.msra.mxu0 0.0
    %133 = vmatpush.msra.mxu0 0.0
    %134 = vmatpush.msra.mxu0 0.0
    %135 = vmatpush.msra.mxu0 0.0
    %136 = vmatpush.msra.mxu0 0.0
    %137 = vmatpush.msra.mxu0 0.0
    %138 = vmatpush.msra.mxu0 0.0
    %139 = vmatpush.msra.mxu0 0.0
    %140 = vmatpush.msra.mxu0 %v44
    %141 = vmatpush.msra.mxu0 %v43
    %142 = vmatmul.f32.gmra.mxu0 %v103
    %v143 = vpop.f32.mrf.mxu0
    %v144 = vadd.f32 %v64, %v143
    %145 = vmatmul.f32.gmra.mxu0 %v106
    %v146 = vpop.f32.mrf.mxu0
    %v147 = vadd.f32 %v69, %v146
    %148 = vmatmul.f32.gmra.mxu0 %v109
    %v149 = vpop.f32.mrf.mxu0
    %v150 = vadd.f32 %v74, %v149
    %151 = vmatmul.f32.gmra.mxu0 %v112
    %v152 = vpop.f32.mrf.mxu0
    %v153 = vadd.f32 %v79, %v152
    %154 = vmatmul.f32.gmra.mxu0 %v115
    %v155 = vpop.f32.mrf.mxu0
    %v156 = vadd.f32 %v84, %v155
    %157 = vmatmul.f32.gmra.mxu0 %v118
    %v158 = vpop.f32.mrf.mxu0
    %v159 = vadd.f32 %v89, %v158
    %160 = vmatmul.f32.gmra.mxu0 %v121
    %v161 = vpop.f32.mrf.mxu0
    %v162 = vadd.f32 %v94, %v161
    %163 = vmatmul.f32.gmra.mxu0 %v124
    %v164 = vpop.f32.mrf.mxu0
    %v165 = vadd.f32 %v99, %v164
    %166 = vdwg.mxu0
    %v167 = vmax.f32 %v144, 0.0
    %v168 = vmax.f32 %v147, 0.0
    %v169 = vmax.f32 %v150, 0.0
    %v170 = vmax.f32 %v153, 0.0
    %v171 = vmax.f32 %v156, 0.0
    %v172 = vmax.f32 %v159, 0.0
    %v173 = vmax.f32 %v162, 0.0
    %v174 = vmax.f32 %v165, 0.0
    %v175 = vld [vmem:[%s3] sm:$0xff]
    %v176 = vld [vmem:[%s3 + $0x8] sm:$0xff]
    %v177 = vld [vmem:[%s3 + $0x10] sm:$0xff]
    %v178 = vld [vmem:[%s3 + $0x18] sm:$0xff]
    %v179 = vld [vmem:[%s4] sm:$0xff]
    %v180 = vld [vmem:[%s4 + $0x8] sm:$0xff]
    %v181 = vld [vmem:[%s4 + $0x10] sm:$0xff]
    %v182 = vld [vmem:[%s4 + $0x18] sm:$0xff]
    %184 = vset.pattern.permute.xlu0 0
    %185 = vperm.xlu0 %184, %v179
    %v186 = vpop.permute.xlu0 %185
    %189 = vset.pattern.permute.xlu0 0
    %190 = vperm.xlu0 %189, %v180
    %v191 = vpop.permute.xlu0 %190
    %194 = vset.pattern.permute.xlu0 0
    %195 = vperm.xlu0 %194, %v181
    %v196 = vpop.permute.xlu0 %195
    %199 = vset.pattern.permute.xlu0 0
    %200 = vperm.xlu0 %199, %v182
    %v201 = vpop.permute.xlu0 %200
    %vm203 = vcmask 523264
    %v205 = vsel %vm203, %v175, 0
    %v208 = vsel %vm203, %v176, 0
    %v211 = vsel %vm203, %v177, 0
    %v214 = vsel %vm203, %v178, 0
    %216 = vmatpush.msra.mxu0 0.0
    %217 = vmatpush.msra.mxu0 0.0
    %218 = vmatpush.msra.mxu0 0.0
    %219 = vmatpush.msra.mxu0 0.0
    %220 = vmatpush.msra.mxu0 0.0
    %221 = vmatpush.msra.mxu0 0.0
    %222 = vmatpush.msra.mxu0 0.0
    %223 = vmatpush.msra.mxu0 0.0
    %224 = vmatpush.msra.mxu0 %v174
    %225 = vmatpush.msra.mxu0 %v173
    %226 = vmatpush.msra.mxu0 %v172
    %227 = vmatpush.msra.mxu0 %v171
    %228 = vmatpush.msra.mxu0 %v170
    %229 = vmatpush.msra.mxu0 %v169
    %230 = vmatpush.msra.mxu0 %v168
    %231 = vmatpush.msra.mxu0 %v167
    %232 = vmatmul.f32.gmra.mxu0 %v205
    %v233 = vpop.f32.mrf.mxu0
    %v234 = vadd.f32 %v186, %v233
    %235 = vmatmul.f32.gmra.mxu0 %v208
    %v236 = vpop.f32.mrf.mxu0
    %v237 = vadd.f32 %v191, %v236
    %238 = vmatmul.f32.gmra.mxu0 %v211
    %v239 = vpop.f32.mrf.mxu0
    %v240 = vadd.f32 %v196, %v239
    %241 = vmatmul.f32.gmra.mxu0 %v214
    %v242 = vpop.f32.mrf.mxu0
    %v243 = vadd.f32 %v201, %v242
    %244 = vdwg.mxu0
    %v245 = vmax.f32 %v234, 0.0
    %v246 = vmax.f32 %v237, 0.0
    %v247 = vmax.f32 %v240, 0.0
    %v248 = vmax.f32 %v243, 0.0
    %v249 = vld [vmem:[%s5] sm:$0xff]
    %v250 = vld [vmem:[%s5 + $0x8] sm:$0xff]
    %v251 = vld [vmem:[%s5 + $0x10] sm:$0xff]
    %v252 = vld [vmem:[%s5 + $0x18] sm:$0xff]
    %v253 = vld [vmem:[%s6] sm:$0xff]
    %v254 = vld [vmem:[%s6 + $0x8] sm:$0xff]
    %v255 = vld [vmem:[%s6 + $0x10] sm:$0xff]
    %v256 = vld [vmem:[%s6 + $0x18] sm:$0xff]
    %258 = vset.pattern.permute.xlu0 0
    %259 = vperm.xlu0 %258, %v253
    %v260 = vpop.permute.xlu0 %259
    %263 = vset.pattern.permute.xlu0 0
    %264 = vperm.xlu0 %263, %v254
    %v265 = vpop.permute.xlu0 %264
    %268 = vset.pattern.permute.xlu0 0
    %269 = vperm.xlu0 %268, %v255
    %v270 = vpop.permute.xlu0 %269
    %273 = vset.pattern.permute.xlu0 0
    %274 = vperm.xlu0 %273, %v256
    %v275 = vpop.permute.xlu0 %274
    %vm277 = vcmask 261120
    %v279 = vsel %vm277, %v249, 0
    %v282 = vsel %vm277, %v250, 0
    %v285 = vsel %vm277, %v251, 0
    %v288 = vsel %vm277, %v252, 0
    %290 = vmatpush.msra.mxu0 0.0
    %291 = vmatpush.msra.mxu0 0.0
    %292 = vmatpush.msra.mxu0 0.0
    %293 = vmatpush.msra.mxu0 0.0
    %294 = vmatpush.msra.mxu0 0.0
    %295 = vmatpush.msra.mxu0 0.0
    %296 = vmatpush.msra.mxu0 0.0
    %297 = vmatpush.msra.mxu0 0.0
    %298 = vmatpush.msra.mxu0 0.0
    %299 = vmatpush.msra.mxu0 0.0
    %300 = vmatpush.msra.mxu0 0.0
    %301 = vmatpush.msra.mxu0 0.0
    %302 = vmatpush.msra.mxu0 %v248
    %303 = vmatpush.msra.mxu0 %v247
    %304 = vmatpush.msra.mxu0 %v246
    %305 = vmatpush.msra.mxu0 %v245
    %306 = vmatmul.f32.gmra.mxu0 %v279
    %v307 = vpop.f32.mrf.mxu0
    %v308 = vadd.f32 %v260, %v307
    %309 = vmatmul.f32.gmra.mxu0 %v282
    %v310 = vpop.f32.mrf.mxu0
    %v311 = vadd.f32 %v265, %v310
    %312 = vmatmul.f32.gmra.mxu0 %v285
    %v313 = vpop.f32.mrf.mxu0
    %v314 = vadd.f32 %v270, %v313
    %315 = vmatmul.f32.gmra.mxu0 %v288
    %v316 = vpop.f32.mrf.mxu0
    %v317 = vadd.f32 %v275, %v316
    %318 = vdwg.mxu0
    %v319 = vmax.f32 %v308, 0.0
    %v320 = vmax.f32 %v311, 0.0
    %v321 = vmax.f32 %v314, 0.0
    %v322 = vmax.f32 %v317, 0.0
    %v323 = vld [vmem:[%s7] sm:$0x1f]
    %v324 = vld [vmem:[%s8] sm:$0x1f]
    %326 = vset.pattern.permute.xlu0 0
    %327 = vperm.xlu0 %326, %v324
    %v328 = vpop.permute.xlu0 %327
    %v331 = vsel %vm277, %v323, 0
    %333 = vmatpush.msra.mxu0 0.0
    %334 = vmatpush.msra.mxu0 0.0
    %335 = vmatpush.msra.mxu0 0.0
    %336 = vmatpush.msra.mxu0 0.0
    %337 = vmatpush.msra.mxu0 0.0
    %338 = vmatpush.msra.mxu0 0.0
    %339 = vmatpush.msra.mxu0 0.0
    %340 = vmatpush.msra.mxu0 0.0
    %341 = vmatpush.msra.mxu0 0.0
    %342 = vmatpush.msra.mxu0 0.0
    %343 = vmatpush.msra.mxu0 0.0
    %344 = vmatpush.msra.mxu0 0.0
    %345 = vmatpush.msra.mxu0 %v322
    %346 = vmatpush.msra.mxu0 %v321
    %347 = vmatpush.msra.mxu0 %v320
    %348 = vmatpush.msra.mxu0 %v319
    %349 = vmatmul.f32.gmra.mxu0 %v331
    %v350 = vpop.f32.mrf.mxu0
    %v351 = vadd.f32 %v328, %v350
    %352 = vdwg.mxu0
    %v353 = vlaneseq
    %v354 = vand.u32 %v353, 127
    %s355 = smul.u32 0, 128
    %v356 = vstv %s355
    %v357 = vadd.s32 %v354, %v356
    %vm358 = vcmp.lt.s32.totalorder %v357, 8
    %v359 = vsel %vm358, 1, 0
    %vm360 = vcmp.eq.s32.totalorder %v359, 1
    %v361 = vsel %vm360, %v351, -inf
    %362 = vst [vmem:[#allocation4] sm:$0x1f] %v361
    %vm363 = vcmask 1044480
    %v364 = vsel %vm363, %v361, -inf
    %365 = vmax.xlane.f32.xlu0 %v364
    %v366 = vpop.xlane.xlu0 %365
    %v367 = vld [vmem:[#allocation2] sm:$0x1f]
    %v368 = vmax.f32 %v367, %v366
    %v369 = vld [vmem:[#allocation3] sm:$0x1f]
    %v370 = vsub.f32 %v367, %v368
    %v371 = vmul.f32 %v370, 1.442695
    %v372 = vpow.pop %v371
    %v373 = vmul.f32 %v369, %v372
    %375 = vset.pattern.permute.xlu0 0
    %376 = vperm.xlu0 %375, %v368
    %v377 = vpop.permute.xlu0 %376
    %v379 = vsub.f32 %v361, %v377
    %v380 = vmul.f32 %v379, 1.442695
    %v381 = vpow.pop %v380
    %v382 = vsel %vm363, %v381, 0.0
    %383 = vadd.xlane.f32.xlu0 %v382
    %v384 = vpop.xlane.xlu0 %383
    %v385 = vadd.f32 %v373, %v384
    %vm386 = vcmask 4096
    %387 = vst.msk [vmem:[#allocation3] sm:$0x1f] %vm386, %v385
    %388 = vst.msk [vmem:[#allocation2] sm:$0x1f] %vm386, %v368
    // Predicated region
    $region42: #{tpu_custom_call.1} parent=1 // pred_check
      %p389 = pneg %p36
    $region43: #{tpu_custom_call.1} parent=1 // pred_check_branch
      %391 = sbr.rel (%p389) target = $region45
    $region44: #{tpu_custom_call.1} parent=1 // pred_region
      %v392 = vld [vmem:[#allocation2] sm:$0x1f]
      %393 = vst.msk [vmem:[%s10] sm:$0x1f] %vm386, %v392
      %v394 = vld [vmem:[#allocation3] sm:$0x1f]
      %395 = vst.msk [vmem:[%s11] sm:$0x1f] %vm386, %v394
    $region45: #{tpu_custom_call.1} parent=1 // pred_fallthru
      _
    // Predicated region
    $region46: #{tpu_custom_call.1} parent=1 // pred_check
      _
    $region47: #{tpu_custom_call.1} parent=1 // pred_check_branch
      %397 = sbr.rel (0) target = $region49
    $region48: #{tpu_custom_call.1} parent=1 // pred_region
      %399 = vsyncadd [#allocation5], 0
      %s401 = sshll.u32 [#allocation4], 4
      %s402 = int_to_ptr.vmem [resolvable:$true] %s401
      %s403 = sshll.u32 %s9, 4
      %s404 = int_to_ptr.hbm [resolvable:$true] %s403
      %406 = dma.vmem_to_hbm [thread:$0]  %s402, 128, %s404, [#allocation5]
    $region49: #{tpu_custom_call.1} parent=1 // pred_fallthru
      _
    // Predicated region
    $region50: #{tpu_custom_call.1} parent=1 // pred_check
      _
    $region51: #{tpu_custom_call.1} parent=1 // pred_check_branch
      %408 = sbr.rel (0) target = $region53
    $region52: #{tpu_custom_call.1} parent=1 // pred_region
      _
    $region53: #{tpu_custom_call.1} parent=1 // pred_fallthru
      _
    // Predicated region
    $region54: #{tpu_custom_call.1} parent=1 // pred_check
      _
    $region55: #{tpu_custom_call.1} parent=1 // pred_check_branch
      %410 = sbr.rel (0) target = $region57
    $region56: #{tpu_custom_call.1} parent=1 // pred_region
      _
    $region57: #{tpu_custom_call.1} parent=1 // pred_fallthru
      _
    // Predicated region
    $region58: #{tpu_custom_call.1} parent=1 // pred_check
      _
    $region59: #{tpu_custom_call.1} parent=1 // pred_check_branch
      %412 = sbr.rel (0) target = $region61
    $region60: #{tpu_custom_call.1} parent=1 // pred_region
      %414 = dma.done [#allocation5], 128
    $region61: #{tpu_custom_call.1} parent=1 // pred_fallthru
      _
    // Predicated region
    $region62: #{tpu_custom_call.1} parent=1 // pred_check
      _
    $region63: #{tpu_custom_call.1} parent=1 // pred_check_branch
      %416 = sbr.rel (0) target = $region65
    $region64: #{tpu_custom_call.1} parent=1 // pred_region
      _
    $region65: #{tpu_custom_call.1} parent=1 // pred_fallthru
      _
    // Predicated region
    $region66: #{tpu_custom_call.1} parent=1 // pred_check
      _
    $region67: #{tpu_custom_call.1} parent=1 // pred_check_branch
      %418 = sbr.rel (0) target = $region69
    $region68: #{tpu_custom_call.1} parent=1 // pred_region
      _
    $region69: #{tpu_custom_call.1} parent=1 // pred_fallthru
      _
    %419 = vsyncpa [#allocation5], 1

</llo_original>
